<compile_context>
chip_gen: v5e
topology: v5e:2x2
jax: 0.10.0
libtpu: 0.0.40
codegen_flags: <defaults>
</compile_context>

<pallas_src>
import functools

import jax
import jax.numpy as jnp
from jax.experimental import pallas as pl
from jax.experimental.pallas import tpu as pltpu


def _round_up(x, m):
    return ((x + m - 1) // m) * m


def ffn_logreg_kernel(x_ref, w1_ref, w23_ref, tgt_ref, logits_ref, nll_ref, *,
                      num_classes):
    # gemm1 + ReLU (MXU matmul, f32 accumulation).
    h = jnp.dot(x_ref[...], w1_ref[...], preferred_element_type=jnp.float32)
    h = jnp.maximum(h, 0.0).astype(w23_ref.dtype)

    # Fused gemm2 @ gemm3 (W23 = W2 @ W3, zero-padded to 128 lanes).
    logits = jnp.dot(h, w23_ref[...], preferred_element_type=jnp.float32)   # (tb, Cpad)
    logits_ref[...] = logits.astype(logits_ref.dtype)

    tb, cpad = logits.shape
    classes = jax.lax.broadcasted_iota(jnp.int32, (tb, cpad), 1)
    valid = classes < num_classes

    # Numerically stable log-softmax over the REAL classes only (padded lanes -> -inf,
    # so they contribute exp(-inf)=0 to the sum and are never selected by the target).
    neg_inf = jnp.float32(-jnp.inf)
    masked = jnp.where(valid, logits, neg_inf)
    m = jnp.max(masked, axis=-1, keepdims=True)
    shifted = jnp.where(valid, logits - m, neg_inf)
    lse = jnp.log(jnp.sum(jnp.exp(shifted), axis=-1, keepdims=True))

    # Per-row NLL: pick log-prob of the target class.  Padded batch rows carry
    # target=-1 (matches no class) -> contribute exactly 0.
    picked = jnp.where(classes == tgt_ref[...], shifted - lse, 0.0)
    nll_row = -jnp.sum(picked, axis=-1)                 # (tb,) -- lives on lanes
    nll_ref[...] = nll_row.reshape(1, 1, tb)            # lane-dense (1, 1, tile_b) store


def prepare_ffn_logreg_weights(w1, w2, w3, *, matmul_dtype=jnp.bfloat16, lane=128):
    """Fuse W2@W3, zero-pad H1 and C up to 128 lanes, cast operands.

    For static weights call this ONCE and reuse the result (hoists the extra
    matmul / pads / casts out of the per-forward path).
    """
    f, h1 = w1.shape
    c = w3.shape[1]
    w23 = jnp.dot(w2.astype(jnp.float32), w3.astype(jnp.float32),
                  preferred_element_type=jnp.float32)
    h1p = max(lane, _round_up(h1, lane))
    cp = max(lane, _round_up(c, lane))
    # Zero-padding is exact: padded W1 columns give h=relu(0)=0, which multiplies
    # padded (zero) W23 rows; padded W23 columns give zero logits that are masked
    # to -inf in the kernel and sliced off in the wrapper.
    w1p = jnp.pad(w1.astype(jnp.float32), ((0, 0), (0, h1p - h1)))
    w23p = jnp.pad(w23, ((0, h1p - h1), (0, cp - c)))
    if matmul_dtype is not None:
        w1p = w1p.astype(matmul_dtype)
        w23p = w23p.astype(matmul_dtype)
    return w1p, w23p


def _default_tile_b(batch):
    """One big tile on single-TC chips; >=2 even tiles on v7x (2 TCs/chip)."""
    b8 = _round_up(max(int(batch), 8), 8)
    try:
        kind = jax.devices()[0].device_kind.lower()
    except Exception:  # pragma: no cover - defensive
        kind = ""
    if "v7" in kind and b8 >= 16:
        return min(_round_up((b8 + 1) // 2, 8), 1024)
    return min(b8, 2048)


@functools.partial(jax.jit, static_argnames=("num_classes", "tile_b"))
def ffn_logreg_forward_prepared(x, w1_pad, w23_pad, targets, *, num_classes, tile_b):
    B, F = x.shape
    H1p = w1_pad.shape[1]
    Cpad = w23_pad.shape[1]

    # Operands in the matmul dtype chosen at weight-prep time (bf16 by default).
    x = x.astype(w1_pad.dtype)

    # Sublane-aligned batch tiles; clamp so we never pad beyond one tile's worth.
    tile_b = min(_round_up(max(int(tile_b), 8), 8), _round_up(B, 8))
    num_tiles = pl.cdiv(B, tile_b)
    B_pad = num_tiles * tile_b

    tgt = targets.astype(jnp.int32).reshape(B, 1)
    if B_pad != B:
        # Padded rows: x=0 and target=-1 (matches no class) -> zero NLL contribution.
        x = jnp.pad(x, ((0, B_pad - B), (0, 0)))
        tgt = jnp.pad(tgt, ((0, B_pad - B), (0, 0)), constant_values=-1)

    itemsize = jnp.dtype(w1_pad.dtype).itemsize
    cost = pl.CostEstimate(
        flops=2 * B_pad * F * H1p + 2 * B_pad * H1p * Cpad,
        transcendentals=B_pad * Cpad + B_pad,
        bytes_accessed=(B_pad * F * itemsize + F * H1p * itemsize
                        + H1p * Cpad * itemsize + B_pad * 4
                        + B_pad * Cpad * 4 + B_pad * 4),
    )

    kernel = functools.partial(ffn_logreg_kernel, num_classes=num_classes)

    logits_pad, nll = pl.pallas_call(
        kernel,
        out_shape=(
            jax.ShapeDtypeStruct((B_pad, Cpad), jnp.float32),
            jax.ShapeDtypeStruct((num_tiles, 1, tile_b), jnp.float32),  # lane-dense NLL
        ),
        grid=(num_tiles,),
        in_specs=[
            pl.BlockSpec((tile_b, F), lambda i: (i, 0)),     # x: batch-tiled, pipelined
            pl.BlockSpec((F, H1p), lambda i: (0, 0)),        # W1 (padded): VMEM-resident
            pl.BlockSpec((H1p, Cpad), lambda i: (0, 0)),     # W2@W3 (padded): resident
            pl.BlockSpec((tile_b, 1), lambda i: (i, 0)),     # targets: small int column
        ],
        out_specs=(
            pl.BlockSpec((tile_b, Cpad), lambda i: (i, 0)),  # logits: 128-lane dense
            pl.BlockSpec((1, 1, tile_b), lambda i: (i, 0, 0)),  # per-row NLL: lane-dense
        ),
        compiler_params=pltpu.CompilerParams(
            # Independent batch tiles -> megacore-parallel on v7x; harmless on v5e/v6e.
            dimension_semantics=("parallel",),
        ),
        cost_estimate=cost,
    )(x, w1_pad, w23_pad, tgt)

    # Mean over the true batch (padded rows contribute exactly 0 NLL).
    loss = jnp.sum(nll) * (1.0 / jnp.float32(B))
    return loss, logits_pad[:B, :num_classes]


def ffn_logreg_forward(x, w1, w2, w3, targets, *, matmul_dtype=jnp.bfloat16,
                       tile_b=None):
    """Convenience wrapper.  For static weights, hoist prepare_ffn_logreg_weights
    out of the training/inference loop and call ffn_logreg_forward_prepared."""
    num_classes = w3.shape[1]
    w1p, w23p = prepare_ffn_logreg_weights(w1, w2, w3, matmul_dtype=matmul_dtype)
    if tile_b is None:
        tile_b = _default_tile_b(x.shape[0])
    return ffn_logreg_forward_prepared(x, w1p, w23p, targets,
                                       num_classes=num_classes, tile_b=int(tile_b))


def xavier_normal(key, fan_in, fan_out):
    # torch.nn.init.xavier_normal_: std = sqrt(2 / (fan_in + fan_out))
    std = (2.0 / (fan_in + fan_out)) ** 0.5
    return std * jax.random.normal(key, (fan_in, fan_out), dtype=jnp.float32)


if __name__ == "__main__":
    # Small, module-consistent shapes.
    B = 64
    num_features = 128
    ffn_embedding_size = 64
    embedding_size = 32
    num_classes = 10

    key = jax.random.PRNGKey(0)
    k_x, k_w1, k_w2, k_w3, k_t = jax.random.split(key, 5)

    x = jax.random.normal(k_x, (B, num_features), dtype=jnp.float32)
    targets = jax.random.randint(k_t, (B,), 0, num_classes, dtype=jnp.int32)

    w1 = xavier_normal(k_w1, num_features, ffn_embedding_size)
    w2 = xavier_normal(k_w2, ffn_embedding_size, embedding_size)
    w3 = xavier_normal(k_w3, embedding_size, num_classes)

    # ---- references -------------------------------------------------------
    h_ref = jnp.maximum(x @ w1, 0.0)
    logits_mod = (h_ref @ w2) @ w3                       # unfused module semantics
    lp_mod = jax.nn.log_softmax(logits_mod, axis=-1)
    loss_mod = -jnp.mean(lp_mod[jnp.arange(B), targets])

    logits_fused = h_ref @ (w2 @ w3)                     # same-structure f32 reference
    lp_fused = jax.nn.log_softmax(logits_fused, axis=-1)
    loss_fused = -jnp.mean(lp_fused[jnp.arange(B), targets])

    # ---- exact f32-operand path (weights prepared once, reused) -----------
    w1p_f32, w23p_f32 = prepare_ffn_logreg_weights(
        w1, w2, w3, matmul_dtype=jnp.float32)
    tile_b = _default_tile_b(B)
    loss32, logits32 = ffn_logreg_forward_prepared(
        x, w1p_f32, w23p_f32, targets, num_classes=num_classes, tile_b=tile_b)
    jax.block_until_ready((loss32, logits32))
    assert logits32.shape == (B, num_classes)
    assert jnp.allclose(logits32, logits_fused, atol=1e-4, rtol=1e-4)
    assert jnp.allclose(loss32, loss_fused, atol=1e-4, rtol=1e-4)
    assert jnp.allclose(logits32, logits_mod, atol=5e-2, rtol=5e-2)
    assert jnp.allclose(loss32, loss_mod, atol=5e-2, rtol=5e-2)

    # ---- default bf16-operand path (f32 softmax/NLL; documented precision) -
    loss_bf, logits_bf = ffn_logreg_forward(x, w1, w2, w3, targets)
    jax.block_until_ready((loss_bf, logits_bf))
    assert logits_bf.shape == (B, num_classes)
    assert jnp.allclose(logits_bf, logits_mod, atol=1e-1, rtol=1e-1)
    assert jnp.allclose(loss_bf, loss_mod, atol=5e-2, rtol=5e-2)

    print("KERNEL_OK")
</pallas_src>

<mosaic_0001>
module attributes {stable_mosaic.version = 11 : i64} {
  func.func @ffn_logreg_kernel(%arg0: i32, %arg1: memref<64x128xf32, #tpu.memory_space<vmem>>, %arg2: memref<128x128xf32, #tpu.memory_space<vmem>>, %arg3: memref<128x128xf32, #tpu.memory_space<vmem>>, %arg4: memref<64x1xi32, #tpu.memory_space<vmem>>, %arg5: memref<64x128xf32, #tpu.memory_space<vmem>>, %arg6: memref<1x1x64xf32, #tpu.memory_space<vmem>>) attributes {dimension_semantics = [#tpu.dimension_semantics<parallel>], iteration_bounds = array<i64: 1>, scalar_prefetch = 0 : i64, scratch_operands = 0 : i64, tpu.core_type = #tpu.core_type<tc>, window_params = [{transform_indices = @transform_0, window_bounds = array<i64: 64, 128>}, {pipeline_mode = #tpu.pipeline_mode<synchronous>, transform_indices = @transform_1, window_bounds = array<i64: 128, 128>}, {pipeline_mode = #tpu.pipeline_mode<synchronous>, transform_indices = @transform_2, window_bounds = array<i64: 128, 128>}, {transform_indices = @transform_3, window_bounds = array<i64: 64, 1>}, {transform_indices = @transform_4, window_bounds = array<i64: 64, 128>}, {transform_indices = @transform_5, window_bounds = array<i64: 1, 1, 64>}]} {
    %c0 = arith.constant 0 : index
    %c0_0 = arith.constant 0 : index
    %0 = vector.load %arg1[%c0, %c0_0] : memref<64x128xf32, #tpu.memory_space<vmem>>, vector<64x128xf32>
    %c0_1 = arith.constant 0 : index
    %c0_2 = arith.constant 0 : index
    %1 = vector.load %arg2[%c0_1, %c0_2] : memref<128x128xf32, #tpu.memory_space<vmem>>, vector<128x128xf32>
    %cst = arith.constant dense<0.000000e+00> : vector<64x128xf32>
    %2 = tpu.matmul %0, %1, %cst {dimension_numbers = #tpu.dot_dimension_numbers<[1], [0], [0], [1], [0, 0, 1, 1], [], []>} : vector<64x128xf32>, vector<128x128xf32>, vector<64x128xf32> -> vector<64x128xf32>
    %cst_3 = arith.constant 0.000000e+00 : f32
    %3 = vector.broadcast %cst_3 : f32 to vector<64x128xf32>
    %4 = arith.maximumf %2, %3 : vector<64x128xf32>
    %c0_4 = arith.constant 0 : index
    %c0_5 = arith.constant 0 : index
    %5 = vector.load %arg3[%c0_4, %c0_5] : memref<128x128xf32, #tpu.memory_space<vmem>>, vector<128x128xf32>
    %cst_6 = arith.constant dense<0.000000e+00> : vector<64x128xf32>
    %6 = tpu.matmul %4, %5, %cst_6 {dimension_numbers = #tpu.dot_dimension_numbers<[1], [0], [0], [1], [0, 0, 1, 1], [], []>} : vector<64x128xf32>, vector<128x128xf32>, vector<64x128xf32> -> vector<64x128xf32>
    %c0_7 = arith.constant 0 : index
    %c0_8 = arith.constant 0 : index
    %7 = vector.load %arg5[%c0_7, %c0_8] : memref<64x128xf32, #tpu.memory_space<vmem>>, vector<64x128xf32>
    tpu.vector_store %arg5[%c0_7, %c0_8], %6 {strides = array<i32>} : memref<64x128xf32, #tpu.memory_space<vmem>>, vector<64x128xf32>,
    %8 = tpu.iota {dimensions = array<i32: 1>} : vector<64x128xi32>
    %c10_i32 = arith.constant 10 : i32
    %9 = vector.broadcast %c10_i32 : i32 to vector<64x128xi32>
    %10 = arith.cmpi slt, %8, %9 : vector<64x128xi32>
    %cst_9 = arith.constant 0xFF800000 : f32
    %11 = vector.broadcast %cst_9 : f32 to vector<64x128xf32>
    %12 = arith.select %10, %6, %11 : vector<64x128xi1>, vector<64x128xf32>
    %cst_10 = arith.constant dense<0xFF800000> : vector<64xf32>
    %13 = vector.multi_reduction <maximumf>, %12, %cst_10 [1] : vector<64x128xf32> to vector<64xf32>
    %14 = vector.shape_cast %13 : vector<64xf32> to vector<64x1xf32>
    %15 = vector.broadcast %14 : vector<64x1xf32> to vector<64x128xf32>
    %16 = arith.subf %6, %15 : vector<64x128xf32>
    %cst_11 = arith.constant 0xFF800000 : f32
    %17 = vector.broadcast %cst_11 : f32 to vector<64x128xf32>
    %18 = arith.select %10, %16, %17 : vector<64x128xi1>, vector<64x128xf32>
    %19 = math.exp %18 : vector<64x128xf32>
    %cst_12 = arith.constant dense<0.000000e+00> : vector<64xf32>
    %20 = vector.multi_reduction <add>, %19, %cst_12 [1] : vector<64x128xf32> to vector<64xf32>
    %21 = vector.shape_cast %20 : vector<64xf32> to vector<64x1xf32>
    %22 = math.log %21 : vector<64x1xf32>
    %c0_13 = arith.constant 0 : index
    %c0_14 = arith.constant 0 : index
    %23 = vector.load %arg4[%c0_13, %c0_14] : memref<64x1xi32, #tpu.memory_space<vmem>>, vector<64x1xi32>
    %24 = vector.broadcast %23 : vector<64x1xi32> to vector<64x128xi32>
    %25 = arith.cmpi eq, %8, %24 : vector<64x128xi32>
    %26 = vector.broadcast %22 : vector<64x1xf32> to vector<64x128xf32>
    %27 = arith.subf %18, %26 : vector<64x128xf32>
    %cst_15 = arith.constant 0.000000e+00 : f32
    %28 = vector.broadcast %cst_15 : f32 to vector<64x128xf32>
    %29 = arith.select %25, %27, %28 : vector<64x128xi1>, vector<64x128xf32>
    %cst_16 = arith.constant dense<0.000000e+00> : vector<64xf32>
    %30 = vector.multi_reduction <add>, %29, %cst_16 [1] : vector<64x128xf32> to vector<64xf32>
    %cst_17 = arith.constant 0.000000e+00 : f32
    %31 = vector.broadcast %cst_17 : f32 to vector<64xf32>
    %32 = arith.subf %31, %30 : vector<64xf32>
    %33 = vector.shape_cast %32 : vector<64xf32> to vector<1x1x64xf32>
    %c0_18 = arith.constant 0 : index
    %c0_19 = arith.constant 0 : index
    %c0_20 = arith.constant 0 : index
    %34 = vector.load %arg6[%c0_18, %c0_19, %c0_20] : memref<1x1x64xf32, #tpu.memory_space<vmem>>, vector<1x1x64xf32>
    tpu.vector_store %arg6[%c0_18, %c0_19, %c0_20], %33 {strides = array<i32>} : memref<1x1x64xf32, #tpu.memory_space<vmem>>, vector<1x1x64xf32>,
    return
  }
  func.func @transform_0(%arg0: i32) -> (i32, i32) {
    %c0_i32 = arith.constant 0 : i32
    %c0_i32_0 = arith.constant 0 : i32
    return %arg0, %c0_i32 : i32, i32
  }
  func.func @transform_1(%arg0: i32) -> (i32, i32) {
    %c0_i32 = arith.constant 0 : i32
    %c0_i32_0 = arith.constant 0 : i32
    %c0_i32_1 = arith.constant 0 : i32
    return %c0_i32, %c0_i32_0 : i32, i32
  }
  func.func @transform_2(%arg0: i32) -> (i32, i32) {
    %c0_i32 = arith.constant 0 : i32
    %c0_i32_0 = arith.constant 0 : i32
    %c0_i32_1 = arith.constant 0 : i32
    return %c0_i32, %c0_i32_0 : i32, i32
  }
  func.func @transform_3(%arg0: i32) -> (i32, i32) {
    %c0_i32 = arith.constant 0 : i32
    %c0_i32_0 = arith.constant 0 : i32
    return %arg0, %c0_i32 : i32, i32
  }
  func.func @transform_4(%arg0: i32) -> (i32, i32) {
    %c0_i32 = arith.constant 0 : i32
    %c0_i32_0 = arith.constant 0 : i32
    return %arg0, %c0_i32 : i32, i32
  }
  func.func @transform_5(%arg0: i32) -> (i32, i32, i32) {
    %c0_i32 = arith.constant 0 : i32
    %c0_i32_0 = arith.constant 0 : i32
    %c0_i32_1 = arith.constant 0 : i32
    return %arg0, %c0_i32, %c0_i32_0 : i32, i32, i32
  }
}

</mosaic_0001>

<llo_original>
// kernel: ffn_logreg_forward_prepared.1
$region0: #{ffn_logreg_forward_prepared.1}
  #allocation0 [shape = 'u32[]', space=smem, size = 0x4, offset = 0x4, fixed_abs, tag = 'smem constant byte address 0x4 - core index']
  #allocation1 [shape = 'u32[72,128]{1,0:T(1,128)}', space=vmem, size = 0x9000, scoped, tag = 'internal scratch']
  %s0 = inlined_call_operand.vmem [shape: f32[64,128], index: 0, kind: input, shape index: {}]
  %s1 = inlined_call_operand.hbm [shape: f32[128,128], index: 1, kind: input, shape index: {}]
  %s2 = inlined_call_operand.hbm [shape: f32[128,128], index: 2, kind: input, shape index: {}]
  %s3 = inlined_call_operand.vmem [shape: s32[64,1], index: 3, kind: input, shape index: {}]
  %s4 = inlined_call_operand.vmem [shape: f32[64,128], index: 4, kind: output, shape index: {0}]
  %s5 = inlined_call_operand.vmem [shape: f32[1,1,64], index: 5, kind: output, shape index: {1}]
  %6 = xla_tuple %s4, %s5
  %s7 = sld [smem:[#allocation0]]
  $region42: #{ffn_logreg_forward_prepared.1} parent=0
    _
  %s9 = ssub.s32 1, %s7
  %s10 = scalar_select 0, %s9, %s7
  $region1: #{ffn_logreg_forward_prepared.1} parent=0
    #allocation2 [shape = 'u8[65536]{0}', space=vmem, size = 0x10000, scoped, tag = 'input window, operand 1, single buffered']
    #allocation3 [shape = 's32[1]{0}', space=sflag, size = 0x4, scoped, tag = 'scoped memory for ffn_logreg_forward_prepared.1']
    #allocation4 [shape = 'u8[65536]{0}', space=vmem, size = 0x10000, scoped, tag = 'input window, operand 2, single buffered']
    #allocation5 [shape = 's32[1]{0}', space=sflag, size = 0x4, scoped, tag = 'scoped memory for ffn_logreg_forward_prepared.1']
    %11 = vsyncpa [#allocation3], 0
    %12 = vsyncpa [#allocation5], 0
    // Predicated region
    $region2: #{ffn_logreg_forward_prepared.1} parent=1 // pred_check
      _
    $region3: #{ffn_logreg_forward_prepared.1} parent=1 // pred_check_branch
      %14 = sbr.rel (0) target = $region5
    $region4: #{ffn_logreg_forward_prepared.1} parent=1 // pred_region
      _
    $region5: #{ffn_logreg_forward_prepared.1} parent=1 // pred_fallthru
      _
    // Predicated region
    $region6: #{ffn_logreg_forward_prepared.1} parent=1 // pred_check
      _
    $region7: #{ffn_logreg_forward_prepared.1} parent=1 // pred_check_branch
      %16 = sbr.rel (0) target = $region9
    $region8: #{ffn_logreg_forward_prepared.1} parent=1 // pred_region
      %18 = vsyncadd [#allocation3], 0
      %s19 = sshll.u32 %s1, 4
      %s20 = int_to_ptr.hbm [resolvable:$true] %s19
      %s21 = sshll.u32 [#allocation2], 4
      %s22 = int_to_ptr.vmem [resolvable:$true] %s21
      %27 = dma.hbm_to_vmem [thread:$0]  %s20, 2048, %s22, [#allocation3], 128, 128, 8
    $region9: #{ffn_logreg_forward_prepared.1} parent=1 // pred_fallthru
      _
    // Predicated region
    $region10: #{ffn_logreg_forward_prepared.1} parent=1 // pred_check
      _
    $region11: #{ffn_logreg_forward_prepared.1} parent=1 // pred_check_branch
      %29 = sbr.rel (0) target = $region13
    $region12: #{ffn_logreg_forward_prepared.1} parent=1 // pred_region
      %31 = vsyncadd [#allocation5], 0
      %s32 = sshll.u32 %s2, 4
      %s33 = int_to_ptr.hbm [resolvable:$true] %s32
      %s34 = sshll.u32 [#allocation4], 4
      %s35 = int_to_ptr.vmem [resolvable:$true] %s34
      %40 = dma.hbm_to_vmem [thread:$0]  %s33, 2048, %s35, [#allocation5], 128, 128, 8
    $region13: #{ffn_logreg_forward_prepared.1} parent=1 // pred_fallthru
      _
    // Predicated region
    $region14: #{ffn_logreg_forward_prepared.1} parent=1 // pred_check
      _
    $region15: #{ffn_logreg_forward_prepared.1} parent=1 // pred_check_branch
      %42 = sbr.rel (0) target = $region17
    $region16: #{ffn_logreg_forward_prepared.1} parent=1 // pred_region
      _
    $region17: #{ffn_logreg_forward_prepared.1} parent=1 // pred_fallthru
      _
    // Predicated region
    $region18: #{ffn_logreg_forward_prepared.1} parent=1 // pred_check
      _
    $region19: #{ffn_logreg_forward_prepared.1} parent=1 // pred_check_branch
      %44 = sbr.rel (0) target = $region21
    $region20: #{ffn_logreg_forward_prepared.1} parent=1 // pred_region
      %46 = dma.done [#allocation3], 2048
    $region21: #{ffn_logreg_forward_prepared.1} parent=1 // pred_fallthru
      _
    // Predicated region
    $region22: #{ffn_logreg_forward_prepared.1} parent=1 // pred_check
      _
    $region23: #{ffn_logreg_forward_prepared.1} parent=1 // pred_check_branch
      %48 = sbr.rel (0) target = $region25
    $region24: #{ffn_logreg_forward_prepared.1} parent=1 // pred_region
      %50 = dma.done [#allocation5], 2048
    $region25: #{ffn_logreg_forward_prepared.1} parent=1 // pred_fallthru
      _
    %v51 = vld [vmem:[%s0] sm:$0xff]
    %v52 = vld [vmem:[%s0 + $0x8] sm:$0xff]
    %v53 = vld [vmem:[%s0 + $0x10] sm:$0xff]
    %v54 = vld [vmem:[%s0 + $0x18] sm:$0xff]
    %v55 = vld [vmem:[%s0 + $0x20] sm:$0xff]
    %v56 = vld [vmem:[%s0 + $0x28] sm:$0xff]
    %v57 = vld [vmem:[%s0 + $0x30] sm:$0xff]
    %v58 = vld [vmem:[%s0 + $0x38] sm:$0xff]
    %v59 = vld [vmem:[#allocation2] sm:$0xff]
    %v60 = vld [vmem:[#allocation2 + $0x8] sm:$0xff]
    %v61 = vld [vmem:[#allocation2 + $0x10] sm:$0xff]
    %v62 = vld [vmem:[#allocation2 + $0x18] sm:$0xff]
    %v63 = vld [vmem:[#allocation2 + $0x20] sm:$0xff]
    %v64 = vld [vmem:[#allocation2 + $0x28] sm:$0xff]
    %v65 = vld [vmem:[#allocation2 + $0x30] sm:$0xff]
    %v66 = vld [vmem:[#allocation2 + $0x38] sm:$0xff]
    %v67 = vld [vmem:[#allocation2 + $0x40] sm:$0xff]
    %v68 = vld [vmem:[#allocation2 + $0x48] sm:$0xff]
    %v69 = vld [vmem:[#allocation2 + $0x50] sm:$0xff]
    %v70 = vld [vmem:[#allocation2 + $0x58] sm:$0xff]
    %v71 = vld [vmem:[#allocation2 + $0x60] sm:$0xff]
    %v72 = vld [vmem:[#allocation2 + $0x68] sm:$0xff]
    %v73 = vld [vmem:[#allocation2 + $0x70] sm:$0xff]
    %v74 = vld [vmem:[#allocation2 + $0x78] sm:$0xff]
    %75 = vmatpush.msra.mxu0 %v74
    %76 = vmatpush.msra.mxu0 %v73
    %77 = vmatpush.msra.mxu0 %v72
    %78 = vmatpush.msra.mxu0 %v71
    %79 = vmatpush.msra.mxu0 %v70
    %80 = vmatpush.msra.mxu0 %v69
    %81 = vmatpush.msra.mxu0 %v68
    %82 = vmatpush.msra.mxu0 %v67
    %83 = vmatpush.msra.mxu0 %v66
    %84 = vmatpush.msra.mxu0 %v65
    %85 = vmatpush.msra.mxu0 %v64
    %86 = vmatpush.msra.mxu0 %v63
    %87 = vmatpush.msra.mxu0 %v62
    %88 = vmatpush.msra.mxu0 %v61
    %89 = vmatpush.msra.mxu0 %v60
    %90 = vmatpush.msra.mxu0 %v59
    %91 = vmatmul.f32.gmra.mxu0 %v51
    %v92 = vpop.f32.mrf.mxu0
    %v93 = vadd.f32 0.0, %v92
    %94 = vmatmul.f32.gmra.mxu0 %v52
    %v95 = vpop.f32.mrf.mxu0
    %v96 = vadd.f32 0.0, %v95
    %97 = vmatmul.f32.gmra.mxu0 %v53
    %v98 = vpop.f32.mrf.mxu0
    %v99 = vadd.f32 0.0, %v98
    %100 = vmatmul.f32.gmra.mxu0 %v54
    %v101 = vpop.f32.mrf.mxu0
    %v102 = vadd.f32 0.0, %v101
    %103 = vmatmul.f32.gmra.mxu0 %v55
    %v104 = vpop.f32.mrf.mxu0
    %v105 = vadd.f32 0.0, %v104
    %106 = vmatmul.f32.gmra.mxu0 %v56
    %v107 = vpop.f32.mrf.mxu0
    %v108 = vadd.f32 0.0, %v107
    %109 = vmatmul.f32.gmra.mxu0 %v57
    %v110 = vpop.f32.mrf.mxu0
    %v111 = vadd.f32 0.0, %v110
    %112 = vmatmul.f32.gmra.mxu0 %v58
    %v113 = vpop.f32.mrf.mxu0
    %v114 = vadd.f32 0.0, %v113
    %115 = vdwg.mxu0
    %v116 = vmax.f32 %v93, 0.0
    %v117 = vmax.f32 %v96, 0.0
    %v118 = vmax.f32 %v99, 0.0
    %v119 = vmax.f32 %v102, 0.0
    %v120 = vmax.f32 %v105, 0.0
    %v121 = vmax.f32 %v108, 0.0
    %v122 = vmax.f32 %v111, 0.0
    %v123 = vmax.f32 %v114, 0.0
    %v124 = vld [vmem:[#allocation4] sm:$0xff]
    %v125 = vld [vmem:[#allocation4 + $0x8] sm:$0xff]
    %v126 = vld [vmem:[#allocation4 + $0x10] sm:$0xff]
    %v127 = vld [vmem:[#allocation4 + $0x18] sm:$0xff]
    %v128 = vld [vmem:[#allocation4 + $0x20] sm:$0xff]
    %v129 = vld [vmem:[#allocation4 + $0x28] sm:$0xff]
    %v130 = vld [vmem:[#allocation4 + $0x30] sm:$0xff]
    %v131 = vld [vmem:[#allocation4 + $0x38] sm:$0xff]
    %v132 = vld [vmem:[#allocation4 + $0x40] sm:$0xff]
    %v133 = vld [vmem:[#allocation4 + $0x48] sm:$0xff]
    %v134 = vld [vmem:[#allocation4 + $0x50] sm:$0xff]
    %v135 = vld [vmem:[#allocation4 + $0x58] sm:$0xff]
    %v136 = vld [vmem:[#allocation4 + $0x60] sm:$0xff]
    %v137 = vld [vmem:[#allocation4 + $0x68] sm:$0xff]
    %v138 = vld [vmem:[#allocation4 + $0x70] sm:$0xff]
    %v139 = vld [vmem:[#allocation4 + $0x78] sm:$0xff]
    %140 = vmatpush.msra.mxu0 %v139
    %141 = vmatpush.msra.mxu0 %v138
    %142 = vmatpush.msra.mxu0 %v137
    %143 = vmatpush.msra.mxu0 %v136
    %144 = vmatpush.msra.mxu0 %v135
    %145 = vmatpush.msra.mxu0 %v134
    %146 = vmatpush.msra.mxu0 %v133
    %147 = vmatpush.msra.mxu0 %v132
    %148 = vmatpush.msra.mxu0 %v131
    %149 = vmatpush.msra.mxu0 %v130
    %150 = vmatpush.msra.mxu0 %v129
    %151 = vmatpush.msra.mxu0 %v128
    %152 = vmatpush.msra.mxu0 %v127
    %153 = vmatpush.msra.mxu0 %v126
    %154 = vmatpush.msra.mxu0 %v125
    %155 = vmatpush.msra.mxu0 %v124
    %156 = vmatmul.f32.gmra.mxu0 %v116
    %v157 = vpop.f32.mrf.mxu0
    %v158 = vadd.f32 0.0, %v157
    %159 = vmatmul.f32.gmra.mxu0 %v117
    %v160 = vpop.f32.mrf.mxu0
    %v161 = vadd.f32 0.0, %v160
    %162 = vmatmul.f32.gmra.mxu0 %v118
    %v163 = vpop.f32.mrf.mxu0
    %v164 = vadd.f32 0.0, %v163
    %165 = vmatmul.f32.gmra.mxu0 %v119
    %v166 = vpop.f32.mrf.mxu0
    %v167 = vadd.f32 0.0, %v166
    %168 = vmatmul.f32.gmra.mxu0 %v120
    %v169 = vpop.f32.mrf.mxu0
    %v170 = vadd.f32 0.0, %v169
    %171 = vmatmul.f32.gmra.mxu0 %v121
    %v172 = vpop.f32.mrf.mxu0
    %v173 = vadd.f32 0.0, %v172
    %174 = vmatmul.f32.gmra.mxu0 %v122
    %v175 = vpop.f32.mrf.mxu0
    %v176 = vadd.f32 0.0, %v175
    %177 = vmatmul.f32.gmra.mxu0 %v123
    %v178 = vpop.f32.mrf.mxu0
    %v179 = vadd.f32 0.0, %v178
    %180 = vdwg.mxu0
    %181 = vst [vmem:[%s4] sm:$0xff] %v158
    %182 = vst [vmem:[%s4 + $0x8] sm:$0xff] %v161
    %183 = vst [vmem:[%s4 + $0x10] sm:$0xff] %v164
    %184 = vst [vmem:[%s4 + $0x18] sm:$0xff] %v167
    %185 = vst [vmem:[%s4 + $0x20] sm:$0xff] %v170
    %186 = vst [vmem:[%s4 + $0x28] sm:$0xff] %v173
    %187 = vst [vmem:[%s4 + $0x30] sm:$0xff] %v176
    %188 = vst [vmem:[%s4 + $0x38] sm:$0xff] %v179
    %v189 = vlaneseq
    %v190 = vand.u32 %v189, 127
    %vm191 = vcmp.lt.s32.totalorder %v190, 10
    %v192 = vsel %vm191, %v158, -inf
    %v193 = vsel %vm191, %v161, -inf
    %v194 = vsel %vm191, %v164, -inf
    %v195 = vsel %vm191, %v167, -inf
    %v196 = vsel %vm191, %v170, -inf
    %v197 = vsel %vm191, %v173, -inf
    %v198 = vsel %vm191, %v176, -inf
    %v199 = vsel %vm191, %v179, -inf
    %200 = vmax.xlane.f32.xlu0 %v192
    %v201 = vpop.xlane.xlu0 %200
    %202 = vmax.xlane.f32.xlu0 %v193
    %v203 = vpop.xlane.xlu0 %202
    %204 = vmax.xlane.f32.xlu0 %v194
    %v205 = vpop.xlane.xlu0 %204
    %206 = vmax.xlane.f32.xlu0 %v195
    %v207 = vpop.xlane.xlu0 %206
    %208 = vmax.xlane.f32.xlu0 %v196
    %v209 = vpop.xlane.xlu0 %208
    %210 = vmax.xlane.f32.xlu0 %v197
    %v211 = vpop.xlane.xlu0 %210
    %212 = vmax.xlane.f32.xlu0 %v198
    %v213 = vpop.xlane.xlu0 %212
    %214 = vmax.xlane.f32.xlu0 %v199
    %v215 = vpop.xlane.xlu0 %214
    %v216 = vsub.f32 %v158, %v201
    %v217 = vsub.f32 %v161, %v203
    %v218 = vsub.f32 %v164, %v205
    %v219 = vsub.f32 %v167, %v207
    %v220 = vsub.f32 %v170, %v209
    %v221 = vsub.f32 %v173, %v211
    %v222 = vsub.f32 %v176, %v213
    %v223 = vsub.f32 %v179, %v215
    %v224 = vsel %vm191, %v216, -inf
    %v225 = vsel %vm191, %v217, -inf
    %v226 = vsel %vm191, %v218, -inf
    %v227 = vsel %vm191, %v219, -inf
    %v228 = vsel %vm191, %v220, -inf
    %v229 = vsel %vm191, %v221, -inf
    %v230 = vsel %vm191, %v222, -inf
    %v231 = vsel %vm191, %v223, -inf
    %v232 = vmul.f32 %v224, 1.442695
    %v233 = vpow.pop %v232
    %v234 = vmul.f32 %v225, 1.442695
    %v235 = vpow.pop %v234
    %v236 = vmul.f32 %v226, 1.442695
    %v237 = vpow.pop %v236
    %v238 = vmul.f32 %v227, 1.442695
    %v239 = vpow.pop %v238
    %v240 = vmul.f32 %v228, 1.442695
    %v241 = vpow.pop %v240
    %v242 = vmul.f32 %v229, 1.442695
    %v243 = vpow.pop %v242
    %v244 = vmul.f32 %v230, 1.442695
    %v245 = vpow.pop %v244
    %v246 = vmul.f32 %v231, 1.442695
    %v247 = vpow.pop %v246
    %248 = vadd.xlane.f32.xlu0 %v233
    %v249 = vpop.xlane.xlu0 %248
    %250 = vadd.xlane.f32.xlu0 %v235
    %v251 = vpop.xlane.xlu0 %250
    %252 = vadd.xlane.f32.xlu0 %v237
    %v253 = vpop.xlane.xlu0 %252
    %254 = vadd.xlane.f32.xlu0 %v239
    %v255 = vpop.xlane.xlu0 %254
    %256 = vadd.xlane.f32.xlu0 %v241
    %v257 = vpop.xlane.xlu0 %256
    %258 = vadd.xlane.f32.xlu0 %v243
    %v259 = vpop.xlane.xlu0 %258
    %260 = vadd.xlane.f32.xlu0 %v245
    %v261 = vpop.xlane.xlu0 %260
    %262 = vadd.xlane.f32.xlu0 %v247
    %v263 = vpop.xlane.xlu0 %262
    %v264 = vlog2.pop %v249
    %v265 = vmul.f32 %v264, 0.6931472
    %v266 = vlog2.pop %v251
    %v267 = vmul.f32 %v266, 0.6931472
    %v268 = vlog2.pop %v253
    %v269 = vmul.f32 %v268, 0.6931472
    %v270 = vlog2.pop %v255
    %v271 = vmul.f32 %v270, 0.6931472
    %v272 = vlog2.pop %v257
    %v273 = vmul.f32 %v272, 0.6931472
    %v274 = vlog2.pop %v259
    %v275 = vmul.f32 %v274, 0.6931472
    %v276 = vlog2.pop %v261
    %v277 = vmul.f32 %v276, 0.6931472
    %v278 = vlog2.pop %v263
    %v279 = vmul.f32 %v278, 0.6931472
    %v280 = vld [vmem:[%s3] sm:$0xff]
    %v281 = vld [vmem:[%s3 + $0x8] sm:$0xff]
    %v282 = vld [vmem:[%s3 + $0x10] sm:$0xff]
    %v283 = vld [vmem:[%s3 + $0x18] sm:$0xff]
    %v284 = vld [vmem:[%s3 + $0x20] sm:$0xff]
    %v285 = vld [vmem:[%s3 + $0x28] sm:$0xff]
    %v286 = vld [vmem:[%s3 + $0x30] sm:$0xff]
    %v287 = vld [vmem:[%s3 + $0x38] sm:$0xff]
    %288 = vset.pattern.permute.xlu0 0
    %289 = vperm.xlu0 %288, %v280
    %v290 = vpop.permute.xlu0 %289
    %291 = vset.pattern.permute.xlu0 0
    %292 = vperm.xlu0 %291, %v281
    %v293 = vpop.permute.xlu0 %292
    %294 = vset.pattern.permute.xlu0 0
    %295 = vperm.xlu0 %294, %v282
    %v296 = vpop.permute.xlu0 %295
    %297 = vset.pattern.permute.xlu0 0
    %298 = vperm.xlu0 %297, %v283
    %v299 = vpop.permute.xlu0 %298
    %300 = vset.pattern.permute.xlu0 0
    %301 = vperm.xlu0 %300, %v284
    %v302 = vpop.permute.xlu0 %301
    %303 = vset.pattern.permute.xlu0 0
    %304 = vperm.xlu0 %303, %v285
    %v305 = vpop.permute.xlu0 %304
    %306 = vset.pattern.permute.xlu0 0
    %307 = vperm.xlu0 %306, %v286
    %v308 = vpop.permute.xlu0 %307
    %309 = vset.pattern.permute.xlu0 0
    %310 = vperm.xlu0 %309, %v287
    %v311 = vpop.permute.xlu0 %310
    %vm312 = vcmp.eq.s32.totalorder %v190, %v290
    %vm313 = vcmp.eq.s32.totalorder %v190, %v293
    %vm314 = vcmp.eq.s32.totalorder %v190, %v296
    %vm315 = vcmp.eq.s32.totalorder %v190, %v299
    %vm316 = vcmp.eq.s32.totalorder %v190, %v302
    %vm317 = vcmp.eq.s32.totalorder %v190, %v305
    %vm318 = vcmp.eq.s32.totalorder %v190, %v308
    %vm319 = vcmp.eq.s32.totalorder %v190, %v311
    %v320 = vsub.f32 %v224, %v265
    %v321 = vsub.f32 %v225, %v267
    %v322 = vsub.f32 %v226, %v269
    %v323 = vsub.f32 %v227, %v271
    %v324 = vsub.f32 %v228, %v273
    %v325 = vsub.f32 %v229, %v275
    %v326 = vsub.f32 %v230, %v277
    %v327 = vsub.f32 %v231, %v279
    %v328 = vsel %vm312, %v320, 0.0
    %v329 = vsel %vm313, %v321, 0.0
    %v330 = vsel %vm314, %v322, 0.0
    %v331 = vsel %vm315, %v323, 0.0
    %v332 = vsel %vm316, %v324, 0.0
    %v333 = vsel %vm317, %v325, 0.0
    %v334 = vsel %vm318, %v326, 0.0
    %v335 = vsel %vm319, %v327, 0.0
    %336 = vadd.xlane.f32.xlu0 %v328
    %v337 = vpop.xlane.xlu0 %336
    %338 = vadd.xlane.f32.xlu0 %v329
    %v339 = vpop.xlane.xlu0 %338
    %340 = vadd.xlane.f32.xlu0 %v330
    %v341 = vpop.xlane.xlu0 %340
    %342 = vadd.xlane.f32.xlu0 %v331
    %v343 = vpop.xlane.xlu0 %342
    %344 = vadd.xlane.f32.xlu0 %v332
    %v345 = vpop.xlane.xlu0 %344
    %346 = vadd.xlane.f32.xlu0 %v333
    %v347 = vpop.xlane.xlu0 %346
    %348 = vadd.xlane.f32.xlu0 %v334
    %v349 = vpop.xlane.xlu0 %348
    %350 = vadd.xlane.f32.xlu0 %v335
    %v351 = vpop.xlane.xlu0 %350
    %v352 = vsub.f32 0.0, %v337
    %v353 = vsub.f32 0.0, %v339
    %v354 = vsub.f32 0.0, %v341
    %v355 = vsub.f32 0.0, %v343
    %v356 = vsub.f32 0.0, %v345
    %v357 = vsub.f32 0.0, %v347
    %v358 = vsub.f32 0.0, %v349
    %v359 = vsub.f32 0.0, %v351
    %v368 = vperm.slane %v352, %v190
    %v369 = vadd.s32 %v190, 4294967288
    %v370 = vperm.slane %v353, %v369
    %vm371 = vcmask 130112
    %v372 = vsel %vm371, %v370, %v368
    %v373 = vadd.s32 %v190, 4294967280
    %v374 = vperm.slane %v354, %v373
    %vm375 = vcmask 195712
    %v376 = vsel %vm375, %v374, %v372
    %v377 = vadd.s32 %v190, 4294967272
    %v378 = vperm.slane %v355, %v377
    %vm379 = vcmask 261312
    %v380 = vsel %vm379, %v378, %v376
    %v381 = vadd.s32 %v190, 4294967264
    %v382 = vperm.slane %v356, %v381
    %vm383 = vcmask 326912
    %v384 = vsel %vm383, %v382, %v380
    %v385 = vadd.s32 %v190, 4294967256
    %v386 = vperm.slane %v357, %v385
    %vm387 = vcmask 392512
    %v388 = vsel %vm387, %v386, %v384
    %v389 = vadd.s32 %v190, 4294967248
    %v390 = vperm.slane %v358, %v389
    %vm391 = vcmask 458112
    %v392 = vsel %vm391, %v390, %v388
    %v393 = vadd.s32 %v190, 4294967240
    %v394 = vperm.slane %v359, %v393
    %vm395 = vcmask 523712
    %v396 = vsel %vm395, %v394, %v392
    %vm398 = vcmask 516096
    %399 = vst.msk [vmem:[%s5] sm:$0x1] %vm398, %v396
    // Predicated region
    $region26: #{ffn_logreg_forward_prepared.1} parent=1 // pred_check
      _
    $region27: #{ffn_logreg_forward_prepared.1} parent=1 // pred_check_branch
      %401 = sbr.rel (0) target = $region29
    $region28: #{ffn_logreg_forward_prepared.1} parent=1 // pred_region
      _
    $region29: #{ffn_logreg_forward_prepared.1} parent=1 // pred_fallthru
      _
    // Predicated region
    $region30: #{ffn_logreg_forward_prepared.1} parent=1 // pred_check
      _
    $region31: #{ffn_logreg_forward_prepared.1} parent=1 // pred_check_branch
      %403 = sbr.rel (0) target = $region33
    $region32: #{ffn_logreg_forward_prepared.1} parent=1 // pred_region
      _
    $region33: #{ffn_logreg_forward_prepared.1} parent=1 // pred_fallthru
      _
    // Predicated region
    $region34: #{ffn_logreg_forward_prepared.1} parent=1 // pred_check
      _
    $region35: #{ffn_logreg_forward_prepared.1} parent=1 // pred_check_branch
      %405 = sbr.rel (0) target = $region37
    $region36: #{ffn_logreg_forward_prepared.1} parent=1 // pred_region
      _
    $region37: #{ffn_logreg_forward_prepared.1} parent=1 // pred_fallthru
      _
    // Predicated region
    $region38: #{ffn_logreg_forward_prepared.1} parent=1 // pred_check
      _
    $region39: #{ffn_logreg_forward_prepared.1} parent=1 // pred_check_branch
      %407 = sbr.rel (0) target = $region41
    $region40: #{ffn_logreg_forward_prepared.1} parent=1 // pred_region
      _
    $region41: #{ffn_logreg_forward_prepared.1} parent=1 // pred_fallthru
      _
    %408 = vsyncpa [#allocation3], 1
    %409 = vsyncpa [#allocation5], 1

</llo_original>
